<compile_context>
chip_gen: v5e
topology: v5e:2x2
jax: 0.10.0
libtpu: 0.0.40
codegen_flags: <defaults>
</compile_context>

<pallas_src>
import functools
import math

import jax
import jax.numpy as jnp
from jax.experimental import pallas as pl
from jax.experimental.pallas import tpu as pltpu


# ---------------------------------------------------------------------------
# Padded-VMEM-footprint helpers
# ---------------------------------------------------------------------------

def _sublane_tile(dtype):
    return {4: 8, 2: 16, 1: 32}.get(jnp.dtype(dtype).itemsize, 8)


def _round_up(x, m):
    return ((x + m - 1) // m) * m


def _padded_block_bytes(block_shape, dtype):
    """VMEM bytes actually occupied by one block (last dim padded to 128 lanes,
    second-to-last padded to the dtype sublane tile)."""
    shape = list(block_shape)
    itemsize = jnp.dtype(dtype).itemsize
    if len(shape) == 1:
        return _round_up(shape[0] * itemsize, 4 * 128)
    shape[-1] = _round_up(shape[-1], 128)
    shape[-2] = _round_up(shape[-2], _sublane_tile(dtype))
    n = 1
    for s in shape:
        n *= s
    return n * itemsize


def _vmem_capacity_bytes():
    try:
        return int(pltpu.get_tpu_info().vmem_capacity_bytes)
    except Exception:
        return 64 * 1024 * 1024  # conservative fallback: v7x per-core VMEM


# ---------------------------------------------------------------------------
# Kernels
# ---------------------------------------------------------------------------

def _gem_freq_kernel_3d(p_ref, x_ref, o_ref, *, eps, log_h):
    # p_ref: (1,) f32 in SMEM; x_ref: (TILE_NC, H, TILE_W); o_ref: (TILE_NC, TILE_W)
    p = p_ref[0]
    inv_p = 1.0 / p
    x = x_ref[...].astype(jnp.float32)
    x = jnp.maximum(x, eps)                      # clamp(min=eps) -> x > 0
    xp = jnp.exp(p * jnp.log(x))                 # x ** p
    s = jnp.sum(xp, axis=1)                      # sum over H
    # mean ** (1/p) == exp((log(sum) - log(H)) / p)
    o_ref[...] = jnp.exp((jnp.log(s) - log_h) * inv_p).astype(o_ref.dtype)


def _gem_freq_kernel_dense(p_ref, x_ref, o_ref, *, eps, log_h, h, w):
    # Small-W path: x_ref is a lane-dense (TILE_NC, H*W) slab; reduce the H
    # groups of W contiguous lanes by log2 lane folding (pure slice + add).
    p = p_ref[0]
    inv_p = 1.0 / p
    x = x_ref[...].astype(jnp.float32)           # (R, H*W)
    x = jnp.maximum(x, eps)
    xp = jnp.exp(p * jnp.log(x))                 # full lane utilization

    acc = None
    hh = h
    while hh > 1:
        if hh % 2 == 1:                          # peel the odd trailing group
            tail = xp[:, (hh - 1) * w: hh * w]
            acc = tail if acc is None else acc + tail
            hh -= 1
        half = hh // 2
        xp = xp[:, : half * w] + xp[:, half * w: hh * w]
        hh = half
    s = xp if acc is None else xp + acc          # (R, W)
    o_ref[...] = jnp.exp((jnp.log(s) - log_h) * inv_p).astype(o_ref.dtype)


# ---------------------------------------------------------------------------
# Tile selection (padded footprint, generation aware)
# ---------------------------------------------------------------------------

def _choose_tiles_dense(nc, hw, dtype, budget_bytes):
    bytes_per_row = _round_up(hw, 128) * jnp.dtype(dtype).itemsize
    rows = max(1, int(budget_bytes // bytes_per_row))
    if rows >= nc:
        tile_nc = nc
    else:
        tile_nc = min(nc, max(8, (rows // 8) * 8))
    # Give a 'parallel' axis >= 2 blocks when possible (v7x has 2 TensorCores).
    if tile_nc == nc and nc >= 16:
        tile_nc = _round_up(pl.cdiv(nc, 2), 8)
    return tile_nc


def _choose_tiles_3d(nc, h, w, dtype, budget_bytes):
    itemsize = jnp.dtype(dtype).itemsize
    h_pad = _round_up(h, _sublane_tile(dtype))

    def rows_for(tw):
        return int(budget_bytes // (h_pad * _round_up(tw, 128) * itemsize))

    # Prefer full width (long contiguous HBM bursts); only split W (multiples
    # of 128, cap 2048) when a full-width 8-row block blows the budget.
    tile_w = w
    if rows_for(w) < 8:
        tw = min((w // 128) * 128, 2048)
        while tw > 128 and rows_for(tw) < 8:
            tw -= 128
        tile_w = max(128, tw)

    rows = rows_for(tile_w)
    if rows >= nc:
        tile_nc = nc
    else:
        tile_nc = min(nc, max(8, (rows // 8) * 8))

    # >= 2 blocks along a parallel axis when the whole problem fits one block.
    if tile_nc == nc and tile_w == w and nc >= 16:
        tile_nc = _round_up(pl.cdiv(nc, 2), 8)
    return tile_nc, tile_w


# ---------------------------------------------------------------------------
# Wrapper
# ---------------------------------------------------------------------------

def gem_freq_pallas(x, p, eps=1e-06):
    """x: (N, C, H, W), p: scalar/(1,) float -> (N, C, 1, W)."""
    N, C, H, W = x.shape
    NC = N * C
    p1 = jnp.asarray(p, jnp.float32).reshape(1)

    vmem_cap = _vmem_capacity_bytes()
    # Per-input-buffer budget (the pipeline double-buffers the input).
    budget = 8 * 1024 * 1024 if vmem_cap >= (100 << 20) else 6 * 1024 * 1024

    eps_f = float(eps)
    log_h = float(math.log(H))

    if W < 128:
        # Lane-dense small-W path.
        HW = H * W
        x2 = x.reshape(NC, HW)
        tile_nc = _choose_tiles_dense(NC, HW, x.dtype, budget)
        grid = (pl.cdiv(NC, tile_nc),)
        in_block = (tile_nc, HW)
        out_block = (tile_nc, W)
        kernel = functools.partial(
            _gem_freq_kernel_dense, eps=eps_f, log_h=log_h, h=H, w=W)
        in_spec = pl.BlockSpec(in_block, lambda i: (i, 0))
        out_spec = pl.BlockSpec(out_block, lambda i: (i, 0))
        dims = ("parallel",)
    else:
        x2 = x.reshape(NC, H, W)
        tile_nc, tile_w = _choose_tiles_3d(NC, H, W, x.dtype, budget)
        grid = (pl.cdiv(NC, tile_nc), pl.cdiv(W, tile_w))
        in_block = (tile_nc, H, tile_w)
        out_block = (tile_nc, tile_w)
        kernel = functools.partial(_gem_freq_kernel_3d, eps=eps_f, log_h=log_h)
        in_spec = pl.BlockSpec(in_block, lambda i, j: (i, 0, j))
        out_spec = pl.BlockSpec(out_block, lambda i, j: (i, j))
        dims = ("parallel", "parallel")

    # Double-buffered pipeline footprint (padded) must fit VMEM.
    needed = 2 * (_padded_block_bytes(in_block, x.dtype)
                  + _padded_block_bytes(out_block, x.dtype)) + (1 << 20)
    if needed > vmem_cap:
        raise ValueError(
            f"GeMFreq tile selection needs ~{needed} bytes of VMEM but only "
            f"{vmem_cap} are available; shape={x.shape}")
    vmem_limit = int(min(max(needed, 32 * 1024 * 1024), vmem_cap))

    out = pl.pallas_call(
        kernel,
        out_shape=jax.ShapeDtypeStruct((NC, W), x.dtype),
        grid_spec=pltpu.PrefetchScalarGridSpec(
            num_scalar_prefetch=0,
            grid=grid,
            in_specs=[
                pl.BlockSpec(memory_space=pltpu.MemorySpace.SMEM),  # p (scalar)
                in_spec,
            ],
            out_specs=out_spec,
        ),
        compiler_params=pltpu.CompilerParams(
            dimension_semantics=dims,
            vmem_limit_bytes=vmem_limit,
        ),
    )(p1, x2)

    return out.reshape(N, C, 1, W)


def gem_freq_ref(x, p, eps=1e-06):
    # Pure-JAX reference mirroring F.avg_pool2d(x.clamp(eps)**p, (H,1))**(1/p)
    xc = jnp.maximum(x, eps) ** p
    return jnp.mean(xc, axis=-2, keepdims=True) ** (1.0 / p)


if __name__ == "__main__":
    p_param = jnp.ones((1,), dtype=jnp.float32) * 3.0  # nn.Parameter(ones(1)*3)
    eps = 1e-06

    # Primary case from the module spec (small-W lane-dense path).
    N, C, H, W = 2, 4, 16, 16
    x = jax.random.normal(jax.random.PRNGKey(0), (N, C, H, W), dtype=jnp.float32)
    out = jax.block_until_ready(gem_freq_pallas(x, p_param, eps))
    ref = gem_freq_ref(x, p_param[0], eps)
    assert out.shape == (N, C, 1, W), out.shape
    err = float(jnp.max(jnp.abs(out - ref)))
    assert jnp.allclose(out, ref, atol=1e-4, rtol=1e-4), err

    # Odd-H case (exercises the odd-group lane fold in the small-W path).
    x2 = jax.random.normal(jax.random.PRNGKey(1), (2, 3, 5, 16), dtype=jnp.float32)
    out2 = jax.block_until_ready(gem_freq_pallas(x2, p_param, eps))
    ref2 = gem_freq_ref(x2, p_param[0], eps)
    assert jnp.allclose(out2, ref2, atol=1e-4, rtol=1e-4)

    # Wide-W case (exercises the full-width 3-D path).
    x3 = jax.random.normal(jax.random.PRNGKey(2), (1, 2, 8, 128), dtype=jnp.float32)
    out3 = jax.block_until_ready(gem_freq_pallas(x3, p_param, eps))
    ref3 = gem_freq_ref(x3, p_param[0], eps)
    assert jnp.allclose(out3, ref3, atol=1e-4, rtol=1e-4)

    print("KERNEL_OK")
</pallas_src>

<mosaic_0001>
module attributes {stable_mosaic.version = 11 : i64} {
  func.func @_gem_freq_kernel_dense(%arg0: i32, %arg1: memref<1xf32, #tpu.memory_space<smem>>, %arg2: memref<8x256xf32, #tpu.memory_space<vmem>>, %arg3: memref<8x16xf32, #tpu.memory_space<vmem>>) attributes {dimension_semantics = [#tpu.dimension_semantics<parallel>], iteration_bounds = array<i64: 1>, scalar_prefetch = 0 : i64, scratch_operands = 0 : i64, tpu.core_type = #tpu.core_type<tc>, window_params = [{transform_indices = @transform_0, window_bounds = array<i64: 1>}, {transform_indices = @transform_1, window_bounds = array<i64: 8, 256>}, {transform_indices = @transform_2, window_bounds = array<i64: 8, 16>}]} {
    %c0 = arith.constant 0 : index
    %0 = memref.load %arg1[%c0] : memref<1xf32, #tpu.memory_space<smem>>
    %cst = arith.constant 1.000000e+00 : f32
    %1 = arith.divf %cst, %0 : f32
    %c0_0 = arith.constant 0 : index
    %c0_1 = arith.constant 0 : index
    %2 = vector.load %arg2[%c0_0, %c0_1] : memref<8x256xf32, #tpu.memory_space<vmem>>, vector<8x256xf32>
    %cst_2 = arith.constant 9.99999997E-7 : f32
    %3 = vector.broadcast %cst_2 : f32 to vector<8x256xf32>
    %4 = arith.maximumf %2, %3 : vector<8x256xf32>
    %5 = math.log %4 : vector<8x256xf32>
    %6 = vector.broadcast %0 : f32 to vector<8x256xf32>
    %7 = arith.mulf %6, %5 : vector<8x256xf32>
    %8 = math.exp %7 : vector<8x256xf32>
    %9 = vector.extract_strided_slice %8 {offsets = [0, 0], sizes = [8, 128], strides = [1, 1]} : vector<8x256xf32> to vector<8x128xf32>
    %10 = vector.extract_strided_slice %8 {offsets = [0, 128], sizes = [8, 128], strides = [1, 1]} : vector<8x256xf32> to vector<8x128xf32>
    %11 = arith.addf %9, %10 : vector<8x128xf32>
    %12 = vector.extract_strided_slice %11 {offsets = [0, 0], sizes = [8, 64], strides = [1, 1]} : vector<8x128xf32> to vector<8x64xf32>
    %13 = vector.extract_strided_slice %11 {offsets = [0, 64], sizes = [8, 64], strides = [1, 1]} : vector<8x128xf32> to vector<8x64xf32>
    %14 = arith.addf %12, %13 : vector<8x64xf32>
    %15 = vector.extract_strided_slice %14 {offsets = [0, 0], sizes = [8, 32], strides = [1, 1]} : vector<8x64xf32> to vector<8x32xf32>
    %16 = vector.extract_strided_slice %14 {offsets = [0, 32], sizes = [8, 32], strides = [1, 1]} : vector<8x64xf32> to vector<8x32xf32>
    %17 = arith.addf %15, %16 : vector<8x32xf32>
    %18 = vector.extract_strided_slice %17 {offsets = [0, 0], sizes = [8, 16], strides = [1, 1]} : vector<8x32xf32> to vector<8x16xf32>
    %19 = vector.extract_strided_slice %17 {offsets = [0, 16], sizes = [8, 16], strides = [1, 1]} : vector<8x32xf32> to vector<8x16xf32>
    %20 = arith.addf %18, %19 : vector<8x16xf32>
    %21 = math.log %20 : vector<8x16xf32>
    %cst_3 = arith.constant 2.77258873 : f32
    %22 = vector.broadcast %cst_3 : f32 to vector<8x16xf32>
    %23 = arith.subf %21, %22 : vector<8x16xf32>
    %24 = vector.broadcast %1 : f32 to vector<8x16xf32>
    %25 = arith.mulf %23, %24 : vector<8x16xf32>
    %26 = math.exp %25 : vector<8x16xf32>
    %c0_4 = arith.constant 0 : index
    %c0_5 = arith.constant 0 : index
    %27 = vector.load %arg3[%c0_4, %c0_5] : memref<8x16xf32, #tpu.memory_space<vmem>>, vector<8x16xf32>
    tpu.vector_store %arg3[%c0_4, %c0_5], %26 {strides = array<i32>} : memref<8x16xf32, #tpu.memory_space<vmem>>, vector<8x16xf32>,
    return
  }
  func.func @transform_0(%arg0: i32) -> i32 {
    %c0_i32 = arith.constant 0 : i32
    %c0_i32_0 = arith.constant 0 : i32
    return %c0_i32 : i32
  }
  func.func @transform_1(%arg0: i32) -> (i32, i32) {
    %c0_i32 = arith.constant 0 : i32
    %c0_i32_0 = arith.constant 0 : i32
    return %arg0, %c0_i32 : i32, i32
  }
  func.func @transform_2(%arg0: i32) -> (i32, i32) {
    %c0_i32 = arith.constant 0 : i32
    %c0_i32_0 = arith.constant 0 : i32
    return %arg0, %c0_i32 : i32, i32
  }
}

</mosaic_0001>

<llo_original>
// kernel: tpu_custom_call.1
$region0: #{tpu_custom_call.1}
  #allocation0 [shape = 'u32[]', space=smem, size = 0x4, offset = 0x4, fixed_abs, tag = 'smem constant byte address 0x4 - core index']
  #allocation1 [shape = 'u32[72,128]{1,0:T(1,128)}', space=vmem, size = 0x9000, scoped, tag = 'internal scratch']
  #allocation2 [shape = 'f32[1]{0:T(128)S(6)}', space=smem, size = 0x200, scoped, tag = 'scoped memory for tpu_custom_call.1']
  %s0 = inlined_call_operand.<no memory space> [shape: f32[1], index: 0, kind: input, shape index: {}]
  %s1 = inlined_call_operand.hbm [shape: f32[8,256], index: 1, kind: input, shape index: {}]
  %s2 = inlined_call_operand.hbm [shape: f32[8,16], index: 2, kind: output, shape index: {}]
  %s3 = sld [smem:[#allocation0]]
  $region22: #{tpu_custom_call.1} parent=0
    _
  %s5 = ssub.s32 1, %s3
  %s6 = scalar_select 0, %s5, %s3
  %7 = sst [smem:[#allocation2]] %s0
  $region1: #{tpu_custom_call.1} parent=0
    #allocation3 [shape = 'u8[8192]{0}', space=vmem, size = 0x2000, scoped, tag = 'input window, operand 1, single buffered']
    #allocation4 [shape = 's32[1]{0}', space=sflag, size = 0x4, scoped, tag = 'scoped memory for tpu_custom_call.1']
    #allocation5 [shape = 's32[1]{0}', space=sflag, size = 0x4, scoped, tag = 'scoped memory for tpu_custom_call.1']
    #allocation6 [shape = 'u8[4096]{0}', space=vmem, size = 0x1000, scoped, tag = 'output window, operand 0, single buffered']
    %8 = vsyncpa [#allocation4], 0
    %9 = vsyncpa [#allocation5], 0
    // Predicated region
    $region2: #{tpu_custom_call.1} parent=1 // pred_check
      _
    $region3: #{tpu_custom_call.1} parent=1 // pred_check_branch
      %11 = sbr.rel (0) target = $region5
    $region4: #{tpu_custom_call.1} parent=1 // pred_region
      _
    $region5: #{tpu_custom_call.1} parent=1 // pred_fallthru
      _
    // Predicated region
    $region6: #{tpu_custom_call.1} parent=1 // pred_check
      _
    $region7: #{tpu_custom_call.1} parent=1 // pred_check_branch
      %13 = sbr.rel (0) target = $region9
    $region8: #{tpu_custom_call.1} parent=1 // pred_region
      %15 = vsyncadd [#allocation4], 0
      %s17 = sshll.u32 %s1, 4
      %s18 = int_to_ptr.hbm [resolvable:$true] %s17
      %s19 = sshll.u32 [#allocation3], 4
      %s20 = int_to_ptr.vmem [resolvable:$true] %s19
      %22 = dma.hbm_to_vmem [thread:$0]  %s18, 256, %s20, [#allocation4]
    $region9: #{tpu_custom_call.1} parent=1 // pred_fallthru
      _
    // Predicated region
    $region10: #{tpu_custom_call.1} parent=1 // pred_check
      _
    $region11: #{tpu_custom_call.1} parent=1 // pred_check_branch
      %24 = sbr.rel (0) target = $region13
    $region12: #{tpu_custom_call.1} parent=1 // pred_region
      %26 = dma.done [#allocation4], 256
    $region13: #{tpu_custom_call.1} parent=1 // pred_fallthru
      _
    %s27 = sld [smem:[#allocation2]]
    %v28 = vstv %s27
    %v29 = vrcp.pop %v28
    %v30 = vmul.f32 %v28, %v29
    %v31 = vsub.f32 1.0, %v30
    %v32 = vmul.f32 %v29, %v31
    %v33 = vadd.f32 %v29, %v32
    %vm34 = vweird.f32 %v28
    %vm35 = vweird.f32 %v29
    %vm36 = vmor %vm34, %vm35
    %v37 = vsel %vm36, %v29, %v33
    %v38 = vand.u32 2147483647, %v28
    %vm39 = vcmp.eq.f32.partialorder %v38, 8.507059e+37
    %v40 = vand.u32 %v28, 2147483648
    %v41 = vor.u32 1.1754944e-38, %v40
    %v42 = vsel %vm39, %v41, %v37
    %s43 = vtos %v42
    %v44 = vld [vmem:[#allocation3] sm:$0xff]
    %v45 = vld [vmem:[#allocation3 + $0x8] sm:$0xff]
    %v46 = vmax.f32 %v44, 1e-06
    %v47 = vmax.f32 %v45, 1e-06
    %v48 = vlog2.pop %v46
    %v49 = vmul.f32 %v48, 0.6931472
    %v50 = vlog2.pop %v47
    %v51 = vmul.f32 %v50, 0.6931472
    %v52 = vstv %s27
    %v53 = vmul.f32 %v52, %v49
    %v54 = vmul.f32 %v52, %v51
    %v55 = vmul.f32 %v53, 1.442695
    %v56 = vpow.pop %v55
    %v57 = vmul.f32 %v54, 1.442695
    %v58 = vpow.pop %v57
    %v59 = vadd.f32 %v56, %v58
    %61 = vrot.lane.b32.xlu0 %v59, 64
    %v62 = vpop.permute.xlu0 %61
    %v64 = vadd.f32 %v59, %v62
    %66 = vrot.lane.b32.xlu0 %v64, 96
    %v67 = vpop.permute.xlu0 %66
    %v69 = vadd.f32 %v64, %v67
    %71 = vrot.lane.b32.xlu0 %v69, 112
    %v72 = vpop.permute.xlu0 %71
    %v74 = vadd.f32 %v69, %v72
    %v75 = vlog2.pop %v74
    %v76 = vmul.f32 %v75, 0.6931472
    %v77 = vsub.f32 %v76, 2.7725887
    %v78 = vstv %s43
    %v79 = vmul.f32 %v77, %v78
    %v80 = vmul.f32 %v79, 1.442695
    %v81 = vpow.pop %v80
    %vm82 = vcmask 130048
    %83 = vst.msk [vmem:[#allocation6] sm:$0xff] %vm82, %v81
    // Predicated region
    $region14: #{tpu_custom_call.1} parent=1 // pred_check
      _
    $region15: #{tpu_custom_call.1} parent=1 // pred_check_branch
      %85 = sbr.rel (0) target = $region17
    $region16: #{tpu_custom_call.1} parent=1 // pred_region
      %87 = vsyncadd [#allocation5], 0
      %s89 = sshll.u32 [#allocation6], 4
      %s90 = int_to_ptr.vmem [resolvable:$true] %s89
      %s91 = sshll.u32 %s2, 4
      %s92 = int_to_ptr.hbm [resolvable:$true] %s91
      %94 = dma.vmem_to_hbm [thread:$0]  %s90, 128, %s92, [#allocation5]
    $region17: #{tpu_custom_call.1} parent=1 // pred_fallthru
      _
    // Predicated region
    $region18: #{tpu_custom_call.1} parent=1 // pred_check
      _
    $region19: #{tpu_custom_call.1} parent=1 // pred_check_branch
      %96 = sbr.rel (0) target = $region21
    $region20: #{tpu_custom_call.1} parent=1 // pred_region
      %98 = dma.done [#allocation5], 128
    $region21: #{tpu_custom_call.1} parent=1 // pred_fallthru
      _
    %99 = vsyncpa [#allocation4], 1
    %100 = vsyncpa [#allocation5], 1

</llo_original>
